<compile_context>
chip_gen: v7x
topology: tpu7x:2x2x1
jax: 0.10.0
libtpu: 0.0.40
codegen_flags: <defaults>
</compile_context>

<pallas_src>
import functools

import jax
import jax.numpy as jnp
from jax.experimental import pallas as pl
from jax.experimental.pallas import tpu as pltpu


_TIME_TILE_MAX = 2048  # lanes per time tile; keeps double-buffered tiles << 32 MiB VMEM


# ----------------------------- Pallas kernel --------------------------------


def _temporal_block_kernel(x_cur_ref, w1_ref, b1_ref, w2_ref, b2_ref, *rest,
                           K, d, T, H, single_tile, has_downsample):
    """One fused TemporalBlock evaluated at grid point (batch b, time tile i).

    x_cur_ref : [1, Cin, T]  current time tile of the block input (bf16)
    w1_ref    : [C1, K*Cin]  conv1 taps flattened tap-major (bf16); b1_ref [C1, 1] f32
    w2_ref    : [C2, K*C1]   conv2 taps flattened (bf16);           b2_ref [C2, 1] f32
    rest      : optional x_prev_ref [1, Cin, T]   (only when there are >1 time tiles)
                optional wd_ref [C2, Cin] (bf16), bd_ref [C2, 1] f32 (only if downsample)
                then o_ref [1, C2, T] (bf16)
    """
    idx = 0
    x_prev_ref = None
    if not single_tile:
        x_prev_ref = rest[idx]; idx += 1
    if has_downsample:
        wd_ref = rest[idx]; bd_ref = rest[idx + 1]; idx += 2
    o_ref = rest[idx]

    x_cur_in = x_cur_ref[0]                      # [Cin, T] bf16 (residual / MXU input)
    x_cur = x_cur_in.astype(jnp.float32)         # f32 vregs for in-kernel shifts/concat
    cin = x_cur.shape[0]
    mxu_dt = x_cur_in.dtype

    # ---- causal window: the 2H timesteps preceding this tile (zeros before t=0) ----
    if H > 0:
        if single_tile:
            halo = jnp.zeros((cin, 2 * H), jnp.float32)
        else:
            is_first = pl.program_id(1) == 0
            halo = x_prev_ref[0].astype(jnp.float32)[:, T - 2 * H:]
            halo = jnp.where(is_first, jnp.zeros_like(halo), halo)
        xw = jnp.concatenate([halo, x_cur], axis=-1)           # [Cin, T + 2H]
    else:
        xw = x_cur

    # ---- conv1 + bias + ReLU over the T + H positions conv2 will need -----------
    # tap j reads xw[:, j*d : j*d + T + H]; stack taps along channels -> one matmul.
    xs = jnp.concatenate([xw[:, j * d: j * d + T + H] for j in range(K)], axis=0)
    h = jnp.dot(w1_ref[...], xs.astype(mxu_dt), preferred_element_type=jnp.float32)
    h = jnp.maximum(h + b1_ref[...], 0.0)                      # [C1, T + H]
    # positions before t=0 are conv2's causal *zero* padding, not relu(b1)
    if H > 0:
        t_idx = jax.lax.broadcasted_iota(jnp.int32, h.shape, 1)
        keep = t_idx >= H
        if not single_tile:
            keep = jnp.logical_or(keep, pl.program_id(1) != 0)
        h = jnp.where(keep, h, 0.0)

    # ---- conv2 + bias + ReLU over the T output positions -------------------------
    hs = jnp.concatenate([h[:, j * d: j * d + T] for j in range(K)], axis=0)
    out = jnp.dot(w2_ref[...], hs.astype(mxu_dt), preferred_element_type=jnp.float32)
    out = jnp.maximum(out + b2_ref[...], 0.0)                  # [C2, T]

    # ---- residual (1x1 downsample or identity) + final ReLU ----------------------
    if has_downsample:
        res = jnp.dot(wd_ref[...], x_cur_in, preferred_element_type=jnp.float32)
        res = res + bd_ref[...]
    else:
        res = x_cur                                            # Cin == C2 (identity)

    o_ref[0] = jnp.maximum(out + res, 0.0).astype(o_ref.dtype)


# ----------------------------- pallas_call wrapper ---------------------------


def _choose_time_tile(seq_len, min_tile):
    if seq_len <= _TIME_TILE_MAX:
        return seq_len
    t = (_TIME_TILE_MAX // 128) * 128
    while t >= 128:
        if seq_len % t == 0 and t >= min_tile:
            return t
        t -= 128
    return seq_len  # fallback: single (untiled) time block


def temporal_block(x, p, K, time_tile=None):
    """x: [B, Cin, L] bf16 -> [B, Cout, L] bf16 (one TemporalBlock, fused)."""
    B, Cin, L = x.shape
    d = int(p["dilation"])
    H = (K - 1) * d
    Cout = p["w1"].shape[0]
    has_down = p["wd"] is not None

    T = _choose_time_tile(L, 2 * H) if time_tile is None else int(time_tile)
    assert L % T == 0, (L, T)
    NT = L // T
    single_tile = NT == 1
    if not single_tile:
        assert 2 * H <= T, "time tile must cover the 2*(K-1)*dilation causal halo"

    kernel = functools.partial(
        _temporal_block_kernel, K=K, d=d, T=T, H=H,
        single_tile=single_tile, has_downsample=has_down)

    def _full(a):  # small weights/biases: whole array resident, constant block index
        return pl.BlockSpec(a.shape, lambda b, i: (0,) * a.ndim)

    cur_spec = pl.BlockSpec((1, Cin, T), lambda b, i: (b, 0, i))
    prev_spec = pl.BlockSpec((1, Cin, T), lambda b, i: (b, 0, jnp.maximum(i - 1, 0)))
    out_spec = pl.BlockSpec((1, Cout, T), lambda b, i: (b, 0, i))

    inputs = [x, p["w1"], p["b1"], p["w2"], p["b2"]]
    in_specs = [cur_spec, _full(p["w1"]), _full(p["b1"]),
                _full(p["w2"]), _full(p["b2"])]
    if not single_tile:
        inputs.append(x)             # previous time tile (halo source)
        in_specs.append(prev_spec)
    if has_down:
        inputs += [p["wd"], p["bd"]]
        in_specs += [_full(p["wd"]), _full(p["bd"])]

    return pl.pallas_call(
        kernel,
        grid=(B, NT),
        in_specs=in_specs,
        out_specs=out_spec,
        out_shape=jax.ShapeDtypeStruct((B, Cout, L), x.dtype),
        compiler_params=pltpu.CompilerParams(
            dimension_semantics=("parallel", "parallel"),
            vmem_limit_bytes=32 * 1024 * 1024,
        ),
    )(*inputs)


# ----------------------------- parameters (glue) ----------------------------


def weight_norm_effective(v, g):
    """PyTorch weight_norm (dim=0): W = g * v / ||v||, norm over all dims but 0.
    v: [Cout, Cin, K], g: [Cout]."""
    norm = jnp.sqrt(jnp.sum(v * v, axis=(1, 2), keepdims=True))
    return g[:, None, None] * v / norm


def _flatten_taps(w):
    """Torch conv weight [Cout, Cin, K] -> [Cout, K*Cin] (tap-major columns)."""
    cout, cin, k = w.shape
    return jnp.transpose(w, (0, 2, 1)).reshape(cout, k * cin)


def init_tcn_params(num_inputs, num_channels, kernel_size, key):
    params = []
    in_c = num_inputs
    for i, out_c in enumerate(num_channels):
        dilation = 2 ** i
        key, k1, k2, k3, k4, k5, k6, k7, k8 = jax.random.split(key, 9)
        v1 = 0.01 * jax.random.normal(k1, (out_c, in_c, kernel_size), jnp.float32)
        g1 = 0.5 + jax.random.uniform(k2, (out_c,), jnp.float32)
        b1 = 0.1 * jax.random.normal(k3, (out_c,), jnp.float32)
        v2 = 0.01 * jax.random.normal(k4, (out_c, out_c, kernel_size), jnp.float32)
        g2 = 0.5 + jax.random.uniform(k5, (out_c,), jnp.float32)
        b2 = 0.1 * jax.random.normal(k6, (out_c,), jnp.float32)
        if in_c != out_c:
            wd = (0.01 * jax.random.normal(k7, (out_c, in_c), jnp.float32)).astype(jnp.bfloat16)
            bd = (0.1 * jax.random.normal(k8, (out_c,), jnp.float32)).reshape(out_c, 1)
        else:
            wd, bd = None, None   # identity residual: 1x1 matmul skipped entirely

        params.append(dict(
            dilation=dilation,
            w1=_flatten_taps(weight_norm_effective(v1, g1)).astype(jnp.bfloat16),
            b1=b1.reshape(out_c, 1),
            w2=_flatten_taps(weight_norm_effective(v2, g2)).astype(jnp.bfloat16),
            b2=b2.reshape(out_c, 1),
            wd=wd, bd=bd,
        ))
        in_c = out_c
    return params


# ----------------------------- forward pass ---------------------------------


def tcn_encoder_forward(x_ncl, params, kernel_size, time_tile=None):
    """x_ncl: [batch, input_channels, seq_len] (PyTorch NCL). Returns [1, batch, out_ch]."""
    x = x_ncl.astype(jnp.bfloat16)
    for p in params:
        x = temporal_block(x, p, kernel_size, time_tile=time_tile)
    # output[:, :, -1].unsqueeze(0): last time step of the final block
    return x[:, :, -1].astype(jnp.float32)[None, :, :]


def tcn_encoder_reference(x_ncl, params, K):
    """Pure-JAX reference with the same bf16 storage / f32 accumulation."""
    x = x_ncl.astype(jnp.bfloat16)
    B, _, L = x.shape
    for p in params:
        d = p["dilation"]
        H = (K - 1) * d

        def conv(inp, wflat, b):
            ci = inp.shape[1]
            ip = jnp.pad(inp.astype(jnp.float32), ((0, 0), (0, 0), (H, 0)))
            acc = jnp.zeros((B, wflat.shape[0], L), jnp.float32)
            for j in range(K):
                wj = wflat[:, j * ci:(j + 1) * ci].astype(jnp.float32)
                acc = acc + jnp.einsum("oc,bcl->bol", wj, ip[:, :, j * d:j * d + L])
            return acc + b[None, :, :]

        h = jnp.maximum(conv(x, p["w1"], p["b1"]), 0.0).astype(jnp.bfloat16)
        out = jnp.maximum(conv(h, p["w2"], p["b2"]), 0.0)
        if p["wd"] is not None:
            res = jnp.einsum("oc,bcl->bol", p["wd"].astype(jnp.float32),
                             x.astype(jnp.float32)) + p["bd"][None, :, :]
        else:
            res = x.astype(jnp.float32)
        x = jnp.maximum(out + res, 0.0).astype(jnp.bfloat16)
    return x[:, :, -1].astype(jnp.float32)[None, :, :]


# ----------------------------- main ------------------------------------------


if __name__ == "__main__":
    key = jax.random.PRNGKey(0)
    k_x, k_p, k_x2 = jax.random.split(key, 3)

    batch, num_inputs, seq_len = 2, 4, 16
    num_channels = [8, 8]          # block0: 4->8 (downsample), block1: 8->8 (identity res)
    kernel_size = 2

    params = init_tcn_params(num_inputs, num_channels, kernel_size, k_p)

    # single-time-tile path (covers the causal zero-padding branch)
    x = jax.random.normal(k_x, (batch, num_inputs, seq_len), jnp.float32)
    out = jax.block_until_ready(tcn_encoder_forward(x, params, kernel_size))
    ref = tcn_encoder_reference(x, params, kernel_size)
    assert out.shape == (1, batch, num_channels[-1]), out.shape
    assert jnp.allclose(out, ref, rtol=5e-2, atol=5e-2), "mismatch vs reference (single tile)"

    # multi-time-tile path (exercises the gridded halo / previous-tile branch)
    seq_len2 = 256
    x2 = jax.random.normal(k_x2, (batch, num_inputs, seq_len2), jnp.float32)
    out2 = jax.block_until_ready(tcn_encoder_forward(x2, params, kernel_size, time_tile=128))
    ref2 = tcn_encoder_reference(x2, params, kernel_size)
    assert out2.shape == (1, batch, num_channels[-1]), out2.shape
    assert jnp.allclose(out2, ref2, rtol=5e-2, atol=5e-2), "mismatch vs reference (multi tile)"

    print("KERNEL_OK")
</pallas_src>

<mosaic_0001>
module attributes {stable_mosaic.version = 11 : i64} {
  func.func @_temporal_block_kernel(%arg0: i32, %arg1: i32, %arg2: memref<1x4x16xbf16, #tpu.memory_space<vmem>>, %arg3: memref<8x8xbf16, #tpu.memory_space<vmem>>, %arg4: memref<8x1xf32, #tpu.memory_space<vmem>>, %arg5: memref<8x16xbf16, #tpu.memory_space<vmem>>, %arg6: memref<8x1xf32, #tpu.memory_space<vmem>>, %arg7: memref<8x4xbf16, #tpu.memory_space<vmem>>, %arg8: memref<8x1xf32, #tpu.memory_space<vmem>>, %arg9: memref<1x8x16xbf16, #tpu.memory_space<vmem>>) attributes {dimension_semantics = [#tpu.dimension_semantics<parallel>, #tpu.dimension_semantics<parallel>], iteration_bounds = array<i64: 2, 1>, scalar_prefetch = 0 : i64, scratch_operands = 0 : i64, tpu.core_type = #tpu.core_type<tc>, window_params = [{transform_indices = @transform_0, window_bounds = array<i64: 1, 4, 16>}, {pipeline_mode = #tpu.pipeline_mode<synchronous>, transform_indices = @transform_1, window_bounds = array<i64: 8, 8>}, {pipeline_mode = #tpu.pipeline_mode<synchronous>, transform_indices = @transform_2, window_bounds = array<i64: 8, 1>}, {pipeline_mode = #tpu.pipeline_mode<synchronous>, transform_indices = @transform_3, window_bounds = array<i64: 8, 16>}, {pipeline_mode = #tpu.pipeline_mode<synchronous>, transform_indices = @transform_4, window_bounds = array<i64: 8, 1>}, {pipeline_mode = #tpu.pipeline_mode<synchronous>, transform_indices = @transform_5, window_bounds = array<i64: 8, 4>}, {pipeline_mode = #tpu.pipeline_mode<synchronous>, transform_indices = @transform_6, window_bounds = array<i64: 8, 1>}, {transform_indices = @transform_7, window_bounds = array<i64: 1, 8, 16>}]} {
    %c0 = arith.constant 0 : index
    %c0_0 = arith.constant 0 : index
    %c0_1 = arith.constant 0 : index
    %0 = vector.load %arg2[%c0, %c0_0, %c0_1] : memref<1x4x16xbf16, #tpu.memory_space<vmem>>, vector<1x4x16xbf16>
    %1 = vector.shape_cast %0 : vector<1x4x16xbf16> to vector<4x16xbf16>
    %2 = arith.extf %1 : vector<4x16xbf16> to vector<4x16xf32>
    %cst = arith.constant 0.000000e+00 : f32
    %3 = vector.broadcast %cst : f32 to vector<4x2xf32>
    %4 = tpu.concatenate %3, %2 in 1 : vector<4x2xf32>, vector<4x16xf32> -> vector<4x18xf32>
    %5 = vector.extract_strided_slice %4 {offsets = [0, 0], sizes = [4, 17], strides = [1, 1]} : vector<4x18xf32> to vector<4x17xf32>
    %6 = vector.extract_strided_slice %4 {offsets = [0, 1], sizes = [4, 17], strides = [1, 1]} : vector<4x18xf32> to vector<4x17xf32>
    %7 = tpu.concatenate %5, %6 in 0 : vector<4x17xf32>, vector<4x17xf32> -> vector<8x17xf32>
    %c0_2 = arith.constant 0 : index
    %c0_3 = arith.constant 0 : index
    %8 = vector.load %arg3[%c0_2, %c0_3] : memref<8x8xbf16, #tpu.memory_space<vmem>>, vector<8x8xbf16>
    %9 = arith.truncf %7 : vector<8x17xf32> to vector<8x17xbf16>
    %cst_4 = arith.constant dense<0.000000e+00> : vector<8x17xf32>
    %10 = tpu.matmul %8, %9, %cst_4 {dimension_numbers = #tpu.dot_dimension_numbers<[1], [0], [0], [1], [0, 0, 1, 1], [], []>} : vector<8x8xbf16>, vector<8x17xbf16>, vector<8x17xf32> -> vector<8x17xf32>
    %c0_5 = arith.constant 0 : index
    %c0_6 = arith.constant 0 : index
    %11 = vector.load %arg4[%c0_5, %c0_6] : memref<8x1xf32, #tpu.memory_space<vmem>>, vector<8x1xf32>
    %12 = vector.broadcast %11 : vector<8x1xf32> to vector<8x17xf32>
    %13 = arith.addf %10, %12 : vector<8x17xf32>
    %cst_7 = arith.constant 0.000000e+00 : f32
    %14 = vector.broadcast %cst_7 : f32 to vector<8x17xf32>
    %15 = arith.maximumf %13, %14 : vector<8x17xf32>
    %16 = tpu.iota {dimensions = array<i32: 1>} : vector<8x17xi32>
    %c1_i32 = arith.constant 1 : i32
    %17 = vector.broadcast %c1_i32 : i32 to vector<8x17xi32>
    %18 = arith.cmpi sge, %16, %17 : vector<8x17xi32>
    %cst_8 = arith.constant 0.000000e+00 : f32
    %19 = vector.broadcast %cst_8 : f32 to vector<8x17xf32>
    %20 = arith.select %18, %15, %19 : vector<8x17xi1>, vector<8x17xf32>
    %21 = vector.extract_strided_slice %20 {offsets = [0, 0], sizes = [8, 16], strides = [1, 1]} : vector<8x17xf32> to vector<8x16xf32>
    %22 = vector.extract_strided_slice %20 {offsets = [0, 1], sizes = [8, 16], strides = [1, 1]} : vector<8x17xf32> to vector<8x16xf32>
    %23 = tpu.concatenate %21, %22 in 0 : vector<8x16xf32>, vector<8x16xf32> -> vector<16x16xf32>
    %c0_9 = arith.constant 0 : index
    %c0_10 = arith.constant 0 : index
    %24 = vector.load %arg5[%c0_9, %c0_10] : memref<8x16xbf16, #tpu.memory_space<vmem>>, vector<8x16xbf16>
    %25 = arith.truncf %23 : vector<16x16xf32> to vector<16x16xbf16>
    %cst_11 = arith.constant dense<0.000000e+00> : vector<8x16xf32>
    %26 = tpu.matmul %24, %25, %cst_11 {dimension_numbers = #tpu.dot_dimension_numbers<[1], [0], [0], [1], [0, 0, 1, 1], [], []>} : vector<8x16xbf16>, vector<16x16xbf16>, vector<8x16xf32> -> vector<8x16xf32>
    %c0_12 = arith.constant 0 : index
    %c0_13 = arith.constant 0 : index
    %27 = vector.load %arg6[%c0_12, %c0_13] : memref<8x1xf32, #tpu.memory_space<vmem>>, vector<8x1xf32>
    %28 = vector.broadcast %27 : vector<8x1xf32> to vector<8x16xf32>
    %29 = arith.addf %26, %28 : vector<8x16xf32>
    %cst_14 = arith.constant 0.000000e+00 : f32
    %30 = vector.broadcast %cst_14 : f32 to vector<8x16xf32>
    %31 = arith.maximumf %29, %30 : vector<8x16xf32>
    %c0_15 = arith.constant 0 : index
    %c0_16 = arith.constant 0 : index
    %32 = vector.load %arg7[%c0_15, %c0_16] : memref<8x4xbf16, #tpu.memory_space<vmem>>, vector<8x4xbf16>
    %cst_17 = arith.constant dense<0.000000e+00> : vector<8x16xf32>
    %33 = tpu.matmul %32, %1, %cst_17 {dimension_numbers = #tpu.dot_dimension_numbers<[1], [0], [0], [1], [0, 0, 1, 1], [], []>} : vector<8x4xbf16>, vector<4x16xbf16>, vector<8x16xf32> -> vector<8x16xf32>
    %c0_18 = arith.constant 0 : index
    %c0_19 = arith.constant 0 : index
    %34 = vector.load %arg8[%c0_18, %c0_19] : memref<8x1xf32, #tpu.memory_space<vmem>>, vector<8x1xf32>
    %35 = vector.broadcast %34 : vector<8x1xf32> to vector<8x16xf32>
    %36 = arith.addf %33, %35 : vector<8x16xf32>
    %37 = arith.addf %31, %36 : vector<8x16xf32>
    %cst_20 = arith.constant 0.000000e+00 : f32
    %38 = vector.broadcast %cst_20 : f32 to vector<8x16xf32>
    %39 = arith.maximumf %37, %38 : vector<8x16xf32>
    %40 = arith.truncf %39 : vector<8x16xf32> to vector<8x16xbf16>
    %c0_21 = arith.constant 0 : index
    %c0_22 = arith.constant 0 : index
    %c0_23 = arith.constant 0 : index
    %41 = vector.load %arg9[%c0_21, %c0_22, %c0_23] : memref<1x8x16xbf16, #tpu.memory_space<vmem>>, vector<1x8x16xbf16>
    %42 = vector.shape_cast %41 : vector<1x8x16xbf16> to vector<8x16xbf16>
    %43 = vector.shape_cast %40 : vector<8x16xbf16> to vector<1x8x16xbf16>
    tpu.vector_store %arg9[%c0_21, %c0_22, %c0_23], %43 {strides = array<i32>} : memref<1x8x16xbf16, #tpu.memory_space<vmem>>, vector<1x8x16xbf16>,
    return
  }
  func.func @transform_0(%arg0: i32, %arg1: i32) -> (i32, i32, i32) {
    %c0_i32 = arith.constant 0 : i32
    %c0_i32_0 = arith.constant 0 : i32
    return %arg0, %c0_i32, %arg1 : i32, i32, i32
  }
  func.func @transform_1(%arg0: i32, %arg1: i32) -> (i32, i32) {
    %c0_i32 = arith.constant 0 : i32
    %c0_i32_0 = arith.constant 0 : i32
    %c0_i32_1 = arith.constant 0 : i32
    return %c0_i32, %c0_i32_0 : i32, i32
  }
  func.func @transform_2(%arg0: i32, %arg1: i32) -> (i32, i32) {
    %c0_i32 = arith.constant 0 : i32
    %c0_i32_0 = arith.constant 0 : i32
    %c0_i32_1 = arith.constant 0 : i32
    return %c0_i32, %c0_i32_0 : i32, i32
  }
  func.func @transform_3(%arg0: i32, %arg1: i32) -> (i32, i32) {
    %c0_i32 = arith.constant 0 : i32
    %c0_i32_0 = arith.constant 0 : i32
    %c0_i32_1 = arith.constant 0 : i32
    return %c0_i32, %c0_i32_0 : i32, i32
  }
  func.func @transform_4(%arg0: i32, %arg1: i32) -> (i32, i32) {
    %c0_i32 = arith.constant 0 : i32
    %c0_i32_0 = arith.constant 0 : i32
    %c0_i32_1 = arith.constant 0 : i32
    return %c0_i32, %c0_i32_0 : i32, i32
  }
  func.func @transform_5(%arg0: i32, %arg1: i32) -> (i32, i32) {
    %c0_i32 = arith.constant 0 : i32
    %c0_i32_0 = arith.constant 0 : i32
    %c0_i32_1 = arith.constant 0 : i32
    return %c0_i32, %c0_i32_0 : i32, i32
  }
  func.func @transform_6(%arg0: i32, %arg1: i32) -> (i32, i32) {
    %c0_i32 = arith.constant 0 : i32
    %c0_i32_0 = arith.constant 0 : i32
    %c0_i32_1 = arith.constant 0 : i32
    return %c0_i32, %c0_i32_0 : i32, i32
  }
  func.func @transform_7(%arg0: i32, %arg1: i32) -> (i32, i32, i32) {
    %c0_i32 = arith.constant 0 : i32
    %c0_i32_0 = arith.constant 0 : i32
    return %arg0, %c0_i32, %arg1 : i32, i32, i32
  }
}

</mosaic_0001>

<llo_original>
// kernel: tpu_custom_call.1
$region0: #{tpu_custom_call.1}
  #allocation0 [shape = 'u32[]', space=smem, size = 0x4, offset = 0x4, fixed_abs, tag = 'smem constant byte address 0x4 - core index']
  #allocation1 [shape = 'u32[144,128]{1,0:T(1,128)}', space=vmem, size = 0x12000, scoped, tag = 'internal scratch']
  %s0 = inlined_call_operand.vmem [shape: bf16[2,4,16], index: 0, kind: input, shape index: {}]
  %s1 = inlined_call_operand.vmem [shape: bf16[8,8], index: 1, kind: input, shape index: {}]
  %s2 = inlined_call_operand.vmem [shape: f32[8,1], index: 2, kind: input, shape index: {}]
  %s3 = inlined_call_operand.vmem [shape: bf16[8,16], index: 3, kind: input, shape index: {}]
  %s4 = inlined_call_operand.vmem [shape: f32[8,1], index: 4, kind: input, shape index: {}]
  %s5 = inlined_call_operand.vmem [shape: bf16[8,4], index: 5, kind: input, shape index: {}]
  %s6 = inlined_call_operand.vmem [shape: f32[8,1], index: 6, kind: input, shape index: {}]
  %s7 = inlined_call_operand.hbm [shape: bf16[2,8,16], index: 7, kind: output, shape index: {}]
  %s8 = sld [smem:[#allocation0]]
  $region61: #{tpu_custom_call.1} parent=0
    _
  %s10 = ssub.s32 1, %s8
  %s11 = scalar_select 0, %s10, %s8
  $region1: #{tpu_custom_call.1} parent=0
    #allocation2 [shape = 'u8[4096]{0}', space=vmem, size = 0x1000, scoped, tag = 'output window, operand 0']
    #allocation3 [shape = 's32[2]{0}', space=sflag, size = 0x8, scoped, tag = 'scoped memory for tpu_custom_call.1']
    %12 = vsyncpa [#allocation3], 0
    %s13 = scalar_lea.sflag [#allocation3], 1
    %14 = vsyncpa %s13, 0
    loop: start=0, step=1, limit=4
    $region2: #{tpu_custom_call.1} parent=1 // loop_pre_header
      _
    $region3: #{tpu_custom_call.1} parent=1 // loop_header
      %s16 = sphi 0, %s20
      %p17 = scmp.ge.s32.totalorder %s16, 4
      %s23 = sphi 0, %s35
      %s24 = sphi 0, %s31
      %s25 = sphi 0, %s23
      %s26 = sphi 0, %s24
      %s27 = sphi 0, %s25
      %s28 = sphi 0, %s26
      %s40 = sphi 0, %s42
      %s43 = sphi 0, %s40
      %s44 = sphi 0, %s43
      %s60 = sphi 0, %s44
      %s64 = sphi 0, %s64
      %s66 = sphi 0, %s64
      %s67 = sphi 0, %s66
      %s81 = sphi 0, %s67
      %s85 = sphi 0, %s85
      %s87 = sphi 0, %s85
      %s88 = sphi 0, %s87
      %s102 = sphi 0, %s88
      %s106 = sphi 0, %s106
      %s108 = sphi 0, %s106
      %s109 = sphi 0, %s108
      %s123 = sphi 0, %s109
      %s127 = sphi 0, %s127
      %s129 = sphi 0, %s127
      %s130 = sphi 0, %s129
      %s144 = sphi 0, %s130
      %s148 = sphi 0, %s148
      %s150 = sphi 0, %s148
      %s151 = sphi 0, %s150
      %s165 = sphi 0, %s151
      %s169 = sphi 0, %s169
      %s171 = sphi 0, %s169
      %s172 = sphi 0, %s171
      %s186 = sphi 0, %s172
      %s194 = sphi 0, %s196
      %s197 = sphi 0, %s194
      %s198 = sphi 0, %s197
      %s214 = sphi 0, %s198
    $region4: #{tpu_custom_call.1} parent=1 // loop_header_branch
      %19 = sbr.rel (%p17) target = $region8
    $region5: #{tpu_custom_call.1} parent=1 // loop_body
      %s21 = ssub.s32 %s16, 1
      %s22 = ssub.s32 %s16, 2
      %s29 = sadd.s32 1, %s24
      %p30 = scmp.ge.s32.totalorder %s29, 1
      %s31 = scalar_select %p30, 0, %s29
      %s32 = sadd.s32 1, %s23
      %s33 = scalar_select %p30, %s32, %s23
      %p34 = scmp.ge.s32.totalorder %s33, 2
      %s35 = scalar_select %p34, 0, %s33
      %s36 = ssub.s32 %s23, %s35
      %s37 = ssub.s32 %s24, %s31
      %s38 = sor.u32 %s36, %s37
      %p39 = scmp.eq.s32.totalorder %s38, 0
      %s41 = sadd.s32 %s40, 1
      %s42 = scalar_select %p39, %s40, %s41
      %p45 = pneg %p39
      %p46 = scmp.eq.s32.totalorder %s16, 1
      %p47 = por %p45, %p46
      %p48 = scmp.ne.s32.totalorder %s40, %s43
      %p49 = scmp.eq.s32.totalorder %s16, 0
      %p50 = por %p48, %p49
      %p51 = scmp.ne.s32.totalorder %s40, %s43
      %p52 = scmp.eq.s32.totalorder %s21, 1
      %p53 = por %p51, %p52
      %p54 = scmp.ne.s32.totalorder %s43, %s44
      %p55 = scmp.eq.s32.totalorder %s21, 0
      %p56 = por %p54, %p55
      %p57 = scmp.ne.s32.totalorder %s43, %s44
      %p58 = scmp.eq.s32.totalorder %s22, 1
      %p59 = por %p57, %p58
      %p61 = scmp.ne.s32.totalorder %s44, %s60
      %p62 = scmp.eq.s32.totalorder %s22, 0
      %p63 = por %p61, %p62
      %s65 = sadd.s32 %s64, 1
      %p68 = scmp.eq.s32.totalorder %s16, 1
      %p69 = scmp.ne.s32.totalorder %s64, %s66
      %p70 = scmp.eq.s32.totalorder %s16, 0
      %p71 = por %p69, %p70
      %p72 = scmp.ne.s32.totalorder %s64, %s66
      %p73 = scmp.eq.s32.totalorder %s21, 1
      %p74 = por %p72, %p73
      %p75 = scmp.ne.s32.totalorder %s66, %s67
      %p76 = scmp.eq.s32.totalorder %s21, 0
      %p77 = por %p75, %p76
      %p78 = scmp.ne.s32.totalorder %s66, %s67
      %p79 = scmp.eq.s32.totalorder %s22, 1
      %p80 = por %p78, %p79
      %p82 = scmp.ne.s32.totalorder %s67, %s81
      %p83 = scmp.eq.s32.totalorder %s22, 0
      %p84 = por %p82, %p83
      %s86 = sadd.s32 %s85, 1
      %p89 = scmp.eq.s32.totalorder %s16, 1
      %p90 = scmp.ne.s32.totalorder %s85, %s87
      %p91 = scmp.eq.s32.totalorder %s16, 0
      %p92 = por %p90, %p91
      %p93 = scmp.ne.s32.totalorder %s85, %s87
      %p94 = scmp.eq.s32.totalorder %s21, 1
      %p95 = por %p93, %p94
      %p96 = scmp.ne.s32.totalorder %s87, %s88
      %p97 = scmp.eq.s32.totalorder %s21, 0
      %p98 = por %p96, %p97
      %p99 = scmp.ne.s32.totalorder %s87, %s88
      %p100 = scmp.eq.s32.totalorder %s22, 1
      %p101 = por %p99, %p100
      %p103 = scmp.ne.s32.totalorder %s88, %s102
      %p104 = scmp.eq.s32.totalorder %s22, 0
      %p105 = por %p103, %p104
      %s107 = sadd.s32 %s106, 1
      %p110 = scmp.eq.s32.totalorder %s16, 1
      %p111 = scmp.ne.s32.totalorder %s106, %s108
      %p112 = scmp.eq.s32.totalorder %s16, 0
      %p113 = por %p111, %p112
      %p114 = scmp.ne.s32.totalorder %s106, %s108
      %p115 = scmp.eq.s32.totalorder %s21, 1
      %p116 = por %p114, %p115
      %p117 = scmp.ne.s32.totalorder %s108, %s109
      %p118 = scmp.eq.s32.totalorder %s21, 0
      %p119 = por %p117, %p118
      %p120 = scmp.ne.s32.totalorder %s108, %s109
      %p121 = scmp.eq.s32.totalorder %s22, 1
      %p122 = por %p120, %p121
      %p124 = scmp.ne.s32.totalorder %s109, %s123
      %p125 = scmp.eq.s32.totalorder %s22, 0
      %p126 = por %p124, %p125
      %s128 = sadd.s32 %s127, 1
      %p131 = scmp.eq.s32.totalorder %s16, 1
      %p132 = scmp.ne.s32.totalorder %s127, %s129
      %p133 = scmp.eq.s32.totalorder %s16, 0
      %p134 = por %p132, %p133
      %p135 = scmp.ne.s32.totalorder %s127, %s129
      %p136 = scmp.eq.s32.totalorder %s21, 1
      %p137 = por %p135, %p136
      %p138 = scmp.ne.s32.totalorder %s129, %s130
      %p139 = scmp.eq.s32.totalorder %s21, 0
      %p140 = por %p138, %p139
      %p141 = scmp.ne.s32.totalorder %s129, %s130
      %p142 = scmp.eq.s32.totalorder %s22, 1
      %p143 = por %p141, %p142
      %p145 = scmp.ne.s32.totalorder %s130, %s144
      %p146 = scmp.eq.s32.totalorder %s22, 0
      %p147 = por %p145, %p146
      %s149 = sadd.s32 %s148, 1
      %p152 = scmp.eq.s32.totalorder %s16, 1
      %p153 = scmp.ne.s32.totalorder %s148, %s150
      %p154 = scmp.eq.s32.totalorder %s16, 0
      %p155 = por %p153, %p154
      %p156 = scmp.ne.s32.totalorder %s148, %s150
      %p157 = scmp.eq.s32.totalorder %s21, 1
      %p158 = por %p156, %p157
      %p159 = scmp.ne.s32.totalorder %s150, %s151
      %p160 = scmp.eq.s32.totalorder %s21, 0
      %p161 = por %p159, %p160
      %p162 = scmp.ne.s32.totalorder %s150, %s151
      %p163 = scmp.eq.s32.totalorder %s22, 1
      %p164 = por %p162, %p163
      %p166 = scmp.ne.s32.totalorder %s151, %s165
      %p167 = scmp.eq.s32.totalorder %s22, 0
      %p168 = por %p166, %p167
      %s170 = sadd.s32 %s169, 1
      %p173 = scmp.eq.s32.totalorder %s16, 1
      %p174 = scmp.ne.s32.totalorder %s169, %s171
      %p175 = scmp.eq.s32.totalorder %s16, 0
      %p176 = por %p174, %p175
      %p177 = scmp.ne.s32.totalorder %s169, %s171
      %p178 = scmp.eq.s32.totalorder %s21, 1
      %p179 = por %p177, %p178
      %p180 = scmp.ne.s32.totalorder %s171, %s172
      %p181 = scmp.eq.s32.totalorder %s21, 0
      %p182 = por %p180, %p181
      %p183 = scmp.ne.s32.totalorder %s171, %s172
      %p184 = scmp.eq.s32.totalorder %s22, 1
      %p185 = por %p183, %p184
      %p187 = scmp.ne.s32.totalorder %s172, %s186
      %p188 = scmp.eq.s32.totalorder %s22, 0
      %p189 = por %p187, %p188
      %s190 = ssub.s32 %s23, %s35
      %s191 = ssub.s32 %s24, %s31
      %s192 = sor.u32 %s190, %s191
      %p193 = scmp.eq.s32.totalorder %s192, 0
      %s195 = sadd.s32 %s194, 1
      %s196 = scalar_select %p193, %s194, %s195
      %p199 = pneg %p193
      %p200 = scmp.eq.s32.totalorder %s16, 1
      %p201 = por %p199, %p200
      %p202 = scmp.ne.s32.totalorder %s194, %s197
      %p203 = scmp.eq.s32.totalorder %s16, 0
      %p204 = por %p202, %p203
      %p205 = scmp.ne.s32.totalorder %s194, %s197
      %p206 = scmp.eq.s32.totalorder %s21, 1
      %p207 = por %p205, %p206
      %p208 = scmp.ne.s32.totalorder %s197, %s198
      %p209 = scmp.eq.s32.totalorder %s21, 0
      %p210 = por %p208, %p209
      %p211 = scmp.ne.s32.totalorder %s197, %s198
      %p212 = scmp.eq.s32.totalorder %s22, 1
      %p213 = por %p211, %p212
      %p215 = scmp.ne.s32.totalorder %s198, %s214
      %p216 = scmp.eq.s32.totalorder %s22, 0
      %p217 = por %p215, %p216
      %p218 = scmp.le.s32.totalorder 1, %s16
      %p219 = scmp.lt.s32.totalorder %s16, 3
      %p220 = pnand %p218, %p219
      %p221 = pneg %p220
      // Predicated region
      $region9: #{tpu_custom_call.1} parent=5 // pred_check
        _
      $region10: #{tpu_custom_call.1} parent=5 // pred_check_branch
        %223 = sbr.rel (%p220) target = $region12
      $region11: #{tpu_custom_call.1} parent=5 // pred_region
        %s224 = ssub.s32 %s16, 1
        // Predicated region
        $region13: #{tpu_custom_call.1} parent=11 // pred_check
          %p225 = pneg %p77
        $region14: #{tpu_custom_call.1} parent=11 // pred_check_branch
          %227 = sbr.rel (%p225) target = $region16
        $region15: #{tpu_custom_call.1} parent=11 // pred_region
          _
        $region16: #{tpu_custom_call.1} parent=11 // pred_fallthru
          _
        // Predicated region
        $region17: #{tpu_custom_call.1} parent=11 // pred_check
          %p228 = pneg %p98
        $region18: #{tpu_custom_call.1} parent=11 // pred_check_branch
          %230 = sbr.rel (%p228) target = $region20
        $region19: #{tpu_custom_call.1} parent=11 // pred_region
          _
        $region20: #{tpu_custom_call.1} parent=11 // pred_fallthru
          _
        // Predicated region
        $region21: #{tpu_custom_call.1} parent=11 // pred_check
          %p231 = pneg %p119
        $region22: #{tpu_custom_call.1} parent=11 // pred_check_branch
          %233 = sbr.rel (%p231) target = $region24
        $region23: #{tpu_custom_call.1} parent=11 // pred_region
          _
        $region24: #{tpu_custom_call.1} parent=11 // pred_fallthru
          _
        // Predicated region
        $region25: #{tpu_custom_call.1} parent=11 // pred_check
          %p234 = pneg %p140
        $region26: #{tpu_custom_call.1} parent=11 // pred_check_branch
          %236 = sbr.rel (%p234) target = $region28
        $region27: #{tpu_custom_call.1} parent=11 // pred_region
          _
        $region28: #{tpu_custom_call.1} parent=11 // pred_fallthru
          _
        // Predicated region
        $region29: #{tpu_custom_call.1} parent=11 // pred_check
          %p237 = pneg %p161
        $region30: #{tpu_custom_call.1} parent=11 // pred_check_branch
          %239 = sbr.rel (%p237) target = $region32
        $region31: #{tpu_custom_call.1} parent=11 // pred_region
          _
        $region32: #{tpu_custom_call.1} parent=11 // pred_fallthru
          _
        // Predicated region
        $region33: #{tpu_custom_call.1} parent=11 // pred_check
          %p240 = pneg %p182
        $region34: #{tpu_custom_call.1} parent=11 // pred_check_branch
          %242 = sbr.rel (%p240) target = $region36
        $region35: #{tpu_custom_call.1} parent=11 // pred_region
          _
        $region36: #{tpu_custom_call.1} parent=11 // pred_fallthru
          _
      $region12: #{tpu_custom_call.1} parent=5 // pred_fallthru
        _
      %p243 = scmp.lt.s32.totalorder %s16, 2
      // Predicated region
      $region37: #{tpu_custom_call.1} parent=5 // pred_check
        %p244 = pneg %p243
      $region38: #{tpu_custom_call.1} parent=5 // pred_check_branch
        %246 = sbr.rel (%p244) target = $region40
      $region39: #{tpu_custom_call.1} parent=5 // pred_region
        // Predicated region
        $region41: #{tpu_custom_call.1} parent=39 // pred_check
          %p247 = pneg %p50
        $region42: #{tpu_custom_call.1} parent=39 // pred_check_branch
          %249 = sbr.rel (%p247) target = $region44
        $region43: #{tpu_custom_call.1} parent=39 // pred_region
          %p250 = scmp.lt.s32.totalorder %s23, 1
          %s251 = scalar_select %p250, %s23, 1
          %p252 = scmp.lt.s32.totalorder %s24, 0
          %s253 = scalar_select %p252, %s24, 0
          %s254 = sadd.s32 %s253, %s251
          %s255 = smul.addr %s254, 2
          %s256 = scalar_lea.vmem %s0, %s255
        $region44: #{tpu_custom_call.1} parent=39 // pred_fallthru
          _
      $region40: #{tpu_custom_call.1} parent=5 // pred_fallthru
        _
      %p257 = scmp.le.s32.totalorder 1, %s16
      %p258 = scmp.lt.s32.totalorder %s16, 3
      %p259 = pnand %p257, %p258
      %p260 = pneg %p259
      // Predicated region
      $region45: #{tpu_custom_call.1} parent=5 // pred_check
        _
      $region46: #{tpu_custom_call.1} parent=5 // pred_check_branch
        %262 = sbr.rel (%p259) target = $region48
      $region47: #{tpu_custom_call.1} parent=5 // pred_region
        %s263 = ssub.s32 %s16, 1
        %p264 = scmp.lt.s32.totalorder %s25, 1
        %s265 = scalar_select %p264, %s25, 1
        %p266 = scmp.lt.s32.totalorder %s26, 0
        %s267 = scalar_select %p266, %s26, 0
        %s268 = sadd.s32 %s267, %s265
        %s269 = smul.addr %s268, 2
        %s270 = scalar_lea.vmem %s0, %s269
        %p271 = pneg %p56
        %p272 = pneg %p53
        %p273 = pneg %p77
        %p274 = pneg %p74
        %p275 = pneg %p98
        %p276 = pneg %p95
        %p277 = pneg %p119
        %p278 = pneg %p116
        %p279 = pneg %p140
        %p280 = pneg %p137
        %p281 = pneg %p161
        %p282 = pneg %p158
        %p283 = pneg %p182
        %p284 = pneg %p179
        %p285 = pneg %p210
        %p286 = pneg %p207
        %s287 = sand.u32 %s197, 1
        %s288 = scalar_lea.sflag [#allocation3], %s287
        %s289 = sand.u32 %s197, 1
        %s290 = smul.addr %s289, 4
        %s291 = scalar_lea.vmem [#allocation2], %s290
        %p292 = scmp.lt.s32.totalorder %s25, 1
        %s293 = scalar_select %p292, %s25, 1
        %p294 = scmp.lt.s32.totalorder %s26, 0
        %s295 = scalar_select %p294, %s26, 0
        %s296 = sadd.s32 %s295, %s293
        %s297 = smul.addr %s296, 2
        %s298 = scalar_lea.vmem %s0, %s297
        %v300 = vld [vmem:[%s298] sm:$0x3]
        %v301 = vunpack.c.l.bf16 %v300
        %303 = vrot.lane.b32.xlu0 %v301, 2
        %v304 = vpop.permute.xlu0 %303
        %vm306 = vcmask 15360
        %v307 = vsel %vm306, 0.0, %v304
        %v309 = vrot.slane %v307, 4
        %310 = vrot.lane.b32.xlu0 %v309, 127
        %v311 = vpop.permute.xlu0 %310
        %vm313 = vcmask 1043456
        %v314 = vsel %vm313, %v307, %v311
        %v315 = vld [vmem:[%s1] sm:$0xf]
        %v316 = vpack.c.bf16 %v314, %v314
        %v317 = vld [vmem:[%s2] sm:$0xff]
        %319 = vset.pattern.permute.xlu0 0
        %320 = vperm.xlu0 %319, %v317
        %v321 = vpop.permute.xlu0 %320
        %vm323 = vcmask 64512
        %v325 = vsel %vm323, %v315, 0
        %v328 = vsel %vm313, %v316, 0
        %330 = vmatprep.subr.bf16.mxu0 0
        %331 = vmatpush1.bf16.msra.mxu0 %v328
        %332 = vmatprep.subr.bf16.mxu0 0
        %333 = vmatpush1.bf16.msra.mxu0 0
        %334 = vmatprep.subr.bf16.mxu0 0
        %335 = vmatpush1.bf16.msra.mxu0 0
        %336 = vmatprep.subr.bf16.mxu0 0
        %337 = vmatpush1.bf16.msra.mxu0 0
        %338 = vmatprep.subr.bf16.mxu0 0
        %339 = vmatpush1.bf16.msra.mxu0 0
        %340 = vmatprep.subr.bf16.mxu0 0
        %341 = vmatpush1.bf16.msra.mxu0 0
        %342 = vmatprep.subr.bf16.mxu0 0
        %343 = vmatpush1.bf16.msra.mxu0 0
        %344 = vmatprep.subr.bf16.mxu0 0
        %345 = vmatpush1.bf16.msra.mxu0 0
        %346 = vmatprep.subr.bf16.mxu0 0
        %347 = vmatpush1.bf16.msra.mxu0 0
        %348 = vmatprep.subr.bf16.mxu0 0
        %349 = vmatpush1.bf16.msra.mxu0 0
        %350 = vmatprep.subr.bf16.mxu0 0
        %351 = vmatpush1.bf16.msra.mxu0 0
        %352 = vmatprep.subr.bf16.mxu0 0
        %353 = vmatpush1.bf16.msra.mxu0 0
        %354 = vmatprep.subr.bf16.mxu0 0
        %355 = vmatpush1.bf16.msra.mxu0 0
        %356 = vmatprep.subr.bf16.mxu0 0
        %357 = vmatpush1.bf16.msra.mxu0 0
        %358 = vmatprep.subr.bf16.mxu0 0
        %359 = vmatpush1.bf16.msra.mxu0 0
        %360 = vmatprep.subr.bf16.mxu0 0
        %361 = vmatpush1.bf16.msra.mxu0 0
        %362 = vmatprep.mubr.bf16.mxu0 0
        %363 = vmatmul.mubr.bf16.gmra.mrb[0].mxu0 %v325
        %v364 = vpop.f32.mrb[0].mxu0
        %v365 = vadd.f32 %v321, %v364
        %v366 = vpop.f32.mrb[0].mxu0
        %v367 = vpop.f32.mrb[0].mxu0
        %v368 = vpop.f32.mrb[0].mxu0
        %369 = vdwg.mxu0
        %v370 = vmax.f32 %v365, 0.0
        %v371 = vlaneseq
        %v372 = vand.u32 %v371, 127
        %vm373 = vcmp.ge.s32.totalorder %v372, 1
        %v374 = vsel %vm373, %v370, 0.0
        %376 = vrot.lane.b32.xlu0 %v374, 127
        %v377 = vpop.permute.xlu0 %376
        %v379 = vld [vmem:[%s3] sm:$0xf]
        %v380 = vpack.c.bf16 %v377, %v374
        %v381 = vld [vmem:[%s4] sm:$0xff]
        %383 = vset.pattern.permute.xlu0 0
        %384 = vperm.xlu0 %383, %v381
        %v385 = vpop.permute.xlu0 %384
        %vm387 = vcmask 130048
        %v389 = vsel %vm387, %v379, 0
        %391 = vmatprep.subr.bf16.mxu0 0
        %392 = vmatpush1.bf16.msra.mxu0 %v380
        %393 = vmatprep.subr.bf16.mxu0 0
        %394 = vmatpush1.bf16.msra.mxu0 0
        %395 = vmatprep.subr.bf16.mxu0 0
        %396 = vmatpush1.bf16.msra.mxu0 0
        %397 = vmatprep.subr.bf16.mxu0 0
        %398 = vmatpush1.bf16.msra.mxu0 0
        %399 = vmatprep.subr.bf16.mxu0 0
        %400 = vmatpush1.bf16.msra.mxu0 0
        %401 = vmatprep.subr.bf16.mxu0 0
        %402 = vmatpush1.bf16.msra.mxu0 0
        %403 = vmatprep.subr.bf16.mxu0 0
        %404 = vmatpush1.bf16.msra.mxu0 0
        %405 = vmatprep.subr.bf16.mxu0 0
        %406 = vmatpush1.bf16.msra.mxu0 0
        %407 = vmatprep.subr.bf16.mxu0 0
        %408 = vmatpush1.bf16.msra.mxu0 0
        %409 = vmatprep.subr.bf16.mxu0 0
        %410 = vmatpush1.bf16.msra.mxu0 0
        %411 = vmatprep.subr.bf16.mxu0 0
        %412 = vmatpush1.bf16.msra.mxu0 0
        %413 = vmatprep.subr.bf16.mxu0 0
        %414 = vmatpush1.bf16.msra.mxu0 0
        %415 = vmatprep.subr.bf16.mxu0 0
        %416 = vmatpush1.bf16.msra.mxu0 0
        %417 = vmatprep.subr.bf16.mxu0 0
        %418 = vmatpush1.bf16.msra.mxu0 0
        %419 = vmatprep.subr.bf16.mxu0 0
        %420 = vmatpush1.bf16.msra.mxu0 0
        %421 = vmatprep.subr.bf16.mxu0 0
        %422 = vmatpush1.bf16.msra.mxu0 0
        %423 = vmatprep.mubr.bf16.mxu0 0
        %424 = vmatmul.mubr.bf16.gmra.mrb[0].mxu0 %v389
        %v425 = vpop.f32.mrb[0].mxu0
        %v426 = vadd.f32 %v385, %v425
        %v427 = vpop.f32.mrb[0].mxu0
        %v428 = vpop.f32.mrb[0].mxu0
        %v429 = vpop.f32.mrb[0].mxu0
        %430 = vdwg.mxu0
        %v431 = vmax.f32 %v426, 0.0
        %v432 = vld [vmem:[%s5] sm:$0xf]
        %v433 = vld [vmem:[%s6] sm:$0xff]
        %435 = vset.pattern.permute.xlu0 0
        %436 = vperm.xlu0 %435, %v433
        %v437 = vpop.permute.xlu0 %436
        %vm439 = vcmask 31744
        %v441 = vsel %vm439, %v432, 0
        %vm443 = vcmask 1041408
        %v445 = vsel %vm443, %v300, 0
        %447 = vmatprep.subr.bf16.mxu0 0
        %448 = vmatpush1.bf16.msra.mxu0 %v445
        %449 = vmatprep.subr.bf16.mxu0 0
        %450 = vmatpush1.bf16.msra.mxu0 0
        %451 = vmatprep.subr.bf16.mxu0 0
        %452 = vmatpush1.bf16.msra.mxu0 0
        %453 = vmatprep.subr.bf16.mxu0 0
        %454 = vmatpush1.bf16.msra.mxu0 0
        %455 = vmatprep.subr.bf16.mxu0 0
        %456 = vmatpush1.bf16.msra.mxu0 0
        %457 = vmatprep.subr.bf16.mxu0 0
        %458 = vmatpush1.bf16.msra.mxu0 0
        %459 = vmatprep.subr.bf16.mxu0 0
        %460 = vmatpush1.bf16.msra.mxu0 0
        %461 = vmatprep.subr.bf16.mxu0 0
        %462 = vmatpush1.bf16.msra.mxu0 0
        %463 = vmatprep.subr.bf16.mxu0 0
        %464 = vmatpush1.bf16.msra.mxu0 0
        %465 = vmatprep.subr.bf16.mxu0 0
        %466 = vmatpush1.bf16.msra.mxu0 0
        %467 = vmatprep.subr.bf16.mxu0 0
        %468 = vmatpush1.bf16.msra.mxu0 0
        %469 = vmatprep.subr.bf16.mxu0 0
        %470 = vmatpush1.bf16.msra.mxu0 0
        %471 = vmatprep.subr.bf16.mxu0 0
        %472 = vmatpush1.bf16.msra.mxu0 0
        %473 = vmatprep.subr.bf16.mxu0 0
        %474 = vmatpush1.bf16.msra.mxu0 0
        %475 = vmatprep.subr.bf16.mxu0 0
        %476 = vmatpush1.bf16.msra.mxu0 0
        %477 = vmatprep.subr.bf16.mxu0 0
        %478 = vmatpush1.bf16.msra.mxu0 0
        %479 = vmatprep.mubr.bf16.mxu0 0
        %480 = vmatmul.mubr.bf16.gmra.mrb[0].mxu0 %v441
        %v481 = vpop.f32.mrb[0].mxu0
        %v482 = vadd.f32 %v437, %v481
        %v483 = vpop.f32.mrb[0].mxu0
        %v484 = vpop.f32.mrb[0].mxu0
        %v485 = vpop.f32.mrb[0].mxu0
        %486 = vdwg.mxu0
        %v487 = vadd.f32 %v431, %v482
        %v488 = vmax.f32 %v487, 0.0
        %v489 = vpack.c.bf16 %v488, %v488
        %vm490 = vcmask 125952
        %491 = vst.msk [vmem:[%s291] sm:$0xf] %vm490, %v489
        %s492 = sand.u32 %s197, 1
        %s493 = scalar_lea.sflag [#allocation3], %s492
        %s494 = sand.u32 %s197, 1
        %s495 = smul.addr %s494, 4
        %s496 = scalar_lea.vmem [#allocation2], %s495
        // Predicated region
        $region49: #{tpu_custom_call.1} parent=47 // pred_check
          %p497 = pneg %p207
        $region50: #{tpu_custom_call.1} parent=47 // pred_check_branch
          %499 = sbr.rel (%p497) target = $region52
        $region51: #{tpu_custom_call.1} parent=47 // pred_region
          %s501 = ssub.s32 64, 64
          %502 = vsyncadd %s493, %s501
          %s503 = sadd.s32 %s26, %s25
          %s504 = smul.addr %s503, 64
          %s505 = scalar_lea.hbm %s7, %s504
          %s507 = sshll.u32 %s496, 4
          %s508 = int_to_ptr.vmem [resolvable:$true] %s507
          %510 = dma.vmem_to_hbm [thread:$0]  %s508, 64, %s505, %s493
        $region52: #{tpu_custom_call.1} parent=47 // pred_fallthru
          _
      $region48: #{tpu_custom_call.1} parent=5 // pred_fallthru
        _
      %p511 = scmp.le.s32.totalorder 2, %s16
      // Predicated region
      $region53: #{tpu_custom_call.1} parent=5 // pred_check
        %p512 = pneg %p511
      $region54: #{tpu_custom_call.1} parent=5 // pred_check_branch
        %514 = sbr.rel (%p512) target = $region56
      $region55: #{tpu_custom_call.1} parent=5 // pred_region
        %s515 = ssub.s32 %s16, 2
        // Predicated region
        $region57: #{tpu_custom_call.1} parent=55 // pred_check
          %p516 = pneg %p213
        $region58: #{tpu_custom_call.1} parent=55 // pred_check_branch
          %518 = sbr.rel (%p516) target = $region60
        $region59: #{tpu_custom_call.1} parent=55 // pred_region
          %s519 = sand.u32 %s198, 1
          %s520 = scalar_lea.sflag [#allocation3], %s519
          %s521 = sand.u32 %s198, 1
          %s522 = smul.addr %s521, 4
          %s523 = scalar_lea.vmem [#allocation2], %s522
          %524 = dma.done %s520, 64
        $region60: #{tpu_custom_call.1} parent=55 // pred_fallthru
          _
      $region56: #{tpu_custom_call.1} parent=5 // pred_fallthru
        _
    $region6: #{tpu_custom_call.1} parent=1 // loop_footer
      %s20 = sadd.s32 1, %s16
    $region7: #{tpu_custom_call.1} parent=1 // loop_footer_branch
      %15 = sbr.rel target = $region3
    $region8: #{tpu_custom_call.1} parent=1 // loop_exit
      _
    %525 = vsyncpa [#allocation3], 1
    %s526 = scalar_lea.sflag [#allocation3], 1
    %527 = vsyncpa %s526, 1

</llo_original>
